<compile_context>
chip_gen: v5e
topology: v5e:2x2
jax: 0.10.0
libtpu: 0.0.40
codegen_flags: <defaults>
</compile_context>

<pallas_src>
import functools

import jax
import jax.numpy as jnp
from jax.experimental import pallas as pl
from jax.experimental.pallas import tpu as pltpu


def _pick_block(b, preferred=128):
    """Largest convenient tile: 128 if it divides B, else the whole axis."""
    if b % preferred == 0:
        return preferred
    return b


# ---------------------------------------------------------------------------
# Prologue: m = x @ T  (hoisted out of the pairwise loop; tiny MXU matmul)
# ---------------------------------------------------------------------------
def _project_kernel(x_ref, t_ref, m_ref):
    m_ref[...] = jnp.dot(
        x_ref[...], t_ref[...], preferred_element_type=jnp.float32
    ).astype(m_ref.dtype)


def _project(x, T, block_i):
    B, F_in = x.shape
    F_out = T.shape[1]
    return pl.pallas_call(
        _project_kernel,
        out_shape=jax.ShapeDtypeStruct((B, F_out), jnp.float32),
        grid_spec=pltpu.PrefetchScalarGridSpec(
            num_scalar_prefetch=0,
            grid=(B // block_i,),
            in_specs=[
                pl.BlockSpec((block_i, F_in), lambda i: (i, 0)),
                pl.BlockSpec((F_in, F_out), lambda i: (0, 0)),
            ],
            out_specs=pl.BlockSpec((block_i, F_out), lambda i: (i, 0)),
        ),
        compiler_params=pltpu.CompilerParams(dimension_semantics=("parallel",)),
    )(x, T)


# ---------------------------------------------------------------------------
# Main kernel: tiled pairwise exp(-|m_i - m_j|) reduction + fused concat.
#   x_ref  : (TB_i, F_in)        raw features of the i block (for the concat)
#   m_ref  : (TB_i, F_out)       m, i block (natural layout, i on sublanes)
#   mt_ref : (F_out, TB_j)       m^T, j block (j-batch axis on lanes)
#   o_ref  : (TB_i, F_in+F_out)  fused output block (revisited across j)
#   acc_ref: (TB_i, F_out) f32   VMEM accumulator across j blocks
# ---------------------------------------------------------------------------
def _mbd_pairwise_kernel(x_ref, m_ref, mt_ref, o_ref, acc_ref, *,
                         f_in, f_out, compute_dtype):
    j = pl.program_id(1)

    @pl.when(j == 0)
    def _():
        acc_ref[...] = jnp.zeros_like(acc_ref)

    m_i = m_ref[...].astype(compute_dtype)    # (TB_i, F_out)
    m_j = mt_ref[...].astype(compute_dtype)   # (F_out, TB_j)

    # Small static loop over the feature axis; all heavy VPU/EUP work is on
    # (TB_i, TB_j) tiles with the j-batch axis on lanes (lane-dense).
    for f in range(f_out):
        a = m_i[:, f:f + 1]                   # (TB_i, 1)  -> lane broadcast
        b = m_j[f:f + 1, :]                   # (1, TB_j)  -> sublane broadcast
        p = jnp.exp(-jnp.abs(a - b))          # (TB_i, TB_j)
        col = jnp.sum(p.astype(jnp.float32), axis=-1, keepdims=True)
        acc_ref[:, f:f + 1] += col            # f32 accumulation across j blocks

    @pl.when(j == pl.num_programs(1) - 1)
    def _():
        # Fused concat([x, o], axis=1): one wider output store, no XLA concat.
        o_ref[:, :f_in] = x_ref[...].astype(o_ref.dtype)
        o_ref[:, f_in:] = acc_ref[...].astype(o_ref.dtype)


def minibatch_discrimination(x, T, *, compute_dtype=jnp.float32,
                             block_i=None, block_j=None):
    """Forward of MiniBatchDiscrimination.

    x: (B, in_features), T: (in_features, out_features)
    returns (B, in_features + out_features) == concat([x, o], axis=1).

    compute_dtype: dtype of the pairwise |diff|/exp path.  Keep float32 on
    v5e (no bf16 VPU/EUP); jnp.bfloat16 is a ~2x EUP win on v6e/v7x.  The
    j-sum always accumulates in f32.
    """
    B, F_in = x.shape
    F_in2, F_out = T.shape
    assert F_in == F_in2

    tb_i = block_i or _pick_block(B)
    tb_j = block_j or _pick_block(B)
    assert B % tb_i == 0 and B % tb_j == 0

    # Hoisted projection (computed once, not per j block).
    m = _project(x.astype(jnp.float32), T.astype(jnp.float32), tb_i)
    # Layout glue only: the j-side blocks are consumed with the batch axis on
    # lanes, so feed the kernel a transposed copy of m as well.
    m_t = m.T  # (F_out, B)

    grid = (B // tb_i, B // tb_j)
    kernel = functools.partial(_mbd_pairwise_kernel, f_in=F_in, f_out=F_out,
                               compute_dtype=compute_dtype)

    return pl.pallas_call(
        kernel,
        out_shape=jax.ShapeDtypeStruct((B, F_in + F_out), x.dtype),
        grid_spec=pltpu.PrefetchScalarGridSpec(
            num_scalar_prefetch=0,
            grid=grid,
            in_specs=[
                pl.BlockSpec((tb_i, F_in), lambda i, j: (i, 0)),    # x, i block
                pl.BlockSpec((tb_i, F_out), lambda i, j: (i, 0)),   # m, i block
                pl.BlockSpec((F_out, tb_j), lambda i, j: (0, j)),   # m^T, j block
            ],
            out_specs=pl.BlockSpec((tb_i, F_in + F_out), lambda i, j: (i, 0)),
            scratch_shapes=[pltpu.VMEM((tb_i, F_out), jnp.float32)],
        ),
        compiler_params=pltpu.CompilerParams(
            # i blocks are independent -> "parallel" (shards across the two
            # TensorCores on v7x); j is the reduction axis -> "arbitrary",
            # placed last.
            dimension_semantics=("parallel", "arbitrary"),
        ),
    )(x, m, m_t)


def _reference(x, T):
    m = x @ T
    o = jnp.exp(-jnp.abs(m[:, None, :] - m[None, :, :])).sum(axis=1)
    return jnp.concatenate([x, o], axis=1)


if __name__ == "__main__":
    # Small shapes consistent with the module's forward.
    B, in_features, out_features = 8, 32, 16

    key = jax.random.PRNGKey(0)
    kx, kt, kx2 = jax.random.split(key, 3)
    x = jax.random.normal(kx, (B, in_features), dtype=jnp.float32)
    T = jax.random.normal(kt, (in_features, out_features), dtype=jnp.float32)

    out = jax.block_until_ready(minibatch_discrimination(x, T))
    ref = _reference(x, T)
    assert out.shape == (B, in_features + out_features)
    assert jnp.allclose(out, ref, atol=1e-5, rtol=1e-5)

    # Also exercise the tiled multi-block path (grid=(2,2), 128-wide j blocks)
    # to verify the accumulator / fused-concat pattern at a non-toy batch.
    B2 = 256
    x2 = jax.random.normal(kx2, (B2, in_features), dtype=jnp.float32)
    out2 = jax.block_until_ready(minibatch_discrimination(x2, T))
    ref2 = _reference(x2, T)
    assert out2.shape == (B2, in_features + out_features)
    assert jnp.allclose(out2, ref2, atol=1e-3, rtol=1e-3)

    print("KERNEL_OK")
</pallas_src>

<mosaic_0001>
module attributes {stable_mosaic.version = 11 : i64} {
  func.func @_project_kernel(%arg0: i32, %arg1: memref<8x32xf32, #tpu.memory_space<vmem>>, %arg2: memref<32x16xf32, #tpu.memory_space<vmem>>, %arg3: memref<8x16xf32, #tpu.memory_space<vmem>>) attributes {dimension_semantics = [#tpu.dimension_semantics<parallel>], iteration_bounds = array<i64: 1>, scalar_prefetch = 0 : i64, scratch_operands = 0 : i64, tpu.core_type = #tpu.core_type<tc>, window_params = [{transform_indices = @transform_0, window_bounds = array<i64: 8, 32>}, {pipeline_mode = #tpu.pipeline_mode<synchronous>, transform_indices = @transform_1, window_bounds = array<i64: 32, 16>}, {transform_indices = @transform_2, window_bounds = array<i64: 8, 16>}]} {
    %c0 = arith.constant 0 : index
    %c0_0 = arith.constant 0 : index
    %0 = vector.load %arg1[%c0, %c0_0] : memref<8x32xf32, #tpu.memory_space<vmem>>, vector<8x32xf32>
    %c0_1 = arith.constant 0 : index
    %c0_2 = arith.constant 0 : index
    %1 = vector.load %arg2[%c0_1, %c0_2] : memref<32x16xf32, #tpu.memory_space<vmem>>, vector<32x16xf32>
    %cst = arith.constant dense<0.000000e+00> : vector<8x16xf32>
    %2 = tpu.matmul %0, %1, %cst {dimension_numbers = #tpu.dot_dimension_numbers<[1], [0], [0], [1], [0, 0, 1, 1], [], []>} : vector<8x32xf32>, vector<32x16xf32>, vector<8x16xf32> -> vector<8x16xf32>
    %c0_3 = arith.constant 0 : index
    %c0_4 = arith.constant 0 : index
    %3 = vector.load %arg3[%c0_3, %c0_4] : memref<8x16xf32, #tpu.memory_space<vmem>>, vector<8x16xf32>
    tpu.vector_store %arg3[%c0_3, %c0_4], %2 {strides = array<i32>} : memref<8x16xf32, #tpu.memory_space<vmem>>, vector<8x16xf32>,
    return
  }
  func.func @transform_0(%arg0: i32) -> (i32, i32) {
    %c0_i32 = arith.constant 0 : i32
    %c0_i32_0 = arith.constant 0 : i32
    return %arg0, %c0_i32 : i32, i32
  }
  func.func @transform_1(%arg0: i32) -> (i32, i32) {
    %c0_i32 = arith.constant 0 : i32
    %c0_i32_0 = arith.constant 0 : i32
    %c0_i32_1 = arith.constant 0 : i32
    return %c0_i32, %c0_i32_0 : i32, i32
  }
  func.func @transform_2(%arg0: i32) -> (i32, i32) {
    %c0_i32 = arith.constant 0 : i32
    %c0_i32_0 = arith.constant 0 : i32
    return %arg0, %c0_i32 : i32, i32
  }
}

</mosaic_0001>

<llo_original>
// kernel: tpu_custom_call.1
$region0: #{tpu_custom_call.1}
  #allocation0 [shape = 'u32[]', space=smem, size = 0x4, offset = 0x4, fixed_abs, tag = 'smem constant byte address 0x4 - core index']
  #allocation1 [shape = 'u32[72,128]{1,0:T(1,128)}', space=vmem, size = 0x9000, scoped, tag = 'internal scratch']
  %s0 = inlined_call_operand.vmem [shape: f32[8,32], index: 0, kind: input, shape index: {}]
  %s1 = inlined_call_operand.vmem [shape: f32[32,16], index: 1, kind: input, shape index: {}]
  %s2 = inlined_call_operand.hbm [shape: f32[8,16], index: 2, kind: output, shape index: {}]
  %s3 = sld [smem:[#allocation0]]
  $region18: #{tpu_custom_call.1} parent=0
    _
  %s5 = ssub.s32 1, %s3
  %s6 = scalar_select 0, %s5, %s3
  $region1: #{tpu_custom_call.1} parent=0
    #allocation2 [shape = 'u8[4096]{0}', space=vmem, size = 0x1000, scoped, tag = 'output window, operand 0, single buffered']
    #allocation3 [shape = 's32[1]{0}', space=sflag, size = 0x4, scoped, tag = 'scoped memory for tpu_custom_call.1']
    %7 = vsyncpa [#allocation3], 0
    // Predicated region
    $region2: #{tpu_custom_call.1} parent=1 // pred_check
      _
    $region3: #{tpu_custom_call.1} parent=1 // pred_check_branch
      %9 = sbr.rel (0) target = $region5
    $region4: #{tpu_custom_call.1} parent=1 // pred_region
      _
    $region5: #{tpu_custom_call.1} parent=1 // pred_fallthru
      _
    // Predicated region
    $region6: #{tpu_custom_call.1} parent=1 // pred_check
      _
    $region7: #{tpu_custom_call.1} parent=1 // pred_check_branch
      %11 = sbr.rel (0) target = $region9
    $region8: #{tpu_custom_call.1} parent=1 // pred_region
      _
    $region9: #{tpu_custom_call.1} parent=1 // pred_fallthru
      _
    %v12 = vld [vmem:[%s0] sm:$0xff]
    %v13 = vld [vmem:[%s1] sm:$0xff]
    %v14 = vld [vmem:[%s1 + $0x8] sm:$0xff]
    %v15 = vld [vmem:[%s1 + $0x10] sm:$0xff]
    %v16 = vld [vmem:[%s1 + $0x18] sm:$0xff]
    %vm17 = vcmask 261120
    %v19 = vsel %vm17, %v12, 0
    %21 = vmatpush.msra.mxu0 0.0
    %22 = vmatpush.msra.mxu0 0.0
    %23 = vmatpush.msra.mxu0 0.0
    %24 = vmatpush.msra.mxu0 0.0
    %25 = vmatpush.msra.mxu0 0.0
    %26 = vmatpush.msra.mxu0 0.0
    %27 = vmatpush.msra.mxu0 0.0
    %28 = vmatpush.msra.mxu0 0.0
    %29 = vmatpush.msra.mxu0 0.0
    %30 = vmatpush.msra.mxu0 0.0
    %31 = vmatpush.msra.mxu0 0.0
    %32 = vmatpush.msra.mxu0 0.0
    %33 = vmatpush.msra.mxu0 %v16
    %34 = vmatpush.msra.mxu0 %v15
    %35 = vmatpush.msra.mxu0 %v14
    %36 = vmatpush.msra.mxu0 %v13
    %37 = vmatmul.f32.gmra.mxu0 %v19
    %v38 = vpop.f32.mrf.mxu0
    %v39 = vadd.f32 0.0, %v38
    %40 = vdwg.mxu0
    %vm41 = vcmask 130048
    %42 = vst.msk [vmem:[#allocation2] sm:$0xff] %vm41, %v39
    // Predicated region
    $region10: #{tpu_custom_call.1} parent=1 // pred_check
      _
    $region11: #{tpu_custom_call.1} parent=1 // pred_check_branch
      %44 = sbr.rel (0) target = $region13
    $region12: #{tpu_custom_call.1} parent=1 // pred_region
      %46 = vsyncadd [#allocation3], 0
      %s48 = sshll.u32 [#allocation2], 4
      %s49 = int_to_ptr.vmem [resolvable:$true] %s48
      %s50 = sshll.u32 %s2, 4
      %s51 = int_to_ptr.hbm [resolvable:$true] %s50
      %53 = dma.vmem_to_hbm [thread:$0]  %s49, 128, %s51, [#allocation3]
    $region13: #{tpu_custom_call.1} parent=1 // pred_fallthru
      _
    // Predicated region
    $region14: #{tpu_custom_call.1} parent=1 // pred_check
      _
    $region15: #{tpu_custom_call.1} parent=1 // pred_check_branch
      %55 = sbr.rel (0) target = $region17
    $region16: #{tpu_custom_call.1} parent=1 // pred_region
      %57 = dma.done [#allocation3], 128
    $region17: #{tpu_custom_call.1} parent=1 // pred_fallthru
      _
    %58 = vsyncpa [#allocation3], 1

</llo_original>
